<compile_context>
chip_gen: v5e
topology: v5e:2x2
jax: 0.10.0
libtpu: 0.0.40
codegen_flags: <defaults>
</compile_context>

<pallas_src>
import math
import functools

import jax
import jax.numpy as jnp
from jax import lax
from jax.experimental import pallas as pl
from jax.experimental.pallas import tpu as pltpu


# ------------------------------- helpers -------------------------------------

def _cdiv(a, b):
    return -(-a // b)


def _round_up(x, m):
    return _cdiv(x, m) * m


def _tile(dim, target, align):
    """Pick (block_size, padded_extent) for one dimension.

    Small dims become a single full-extent block (no padding); large dims are
    split into ~target-sized, `align`-aligned blocks with minimal padding.
    """
    if dim <= target:
        return dim, dim
    n_tiles = _cdiv(dim, target)
    t = _round_up(_cdiv(dim, n_tiles), align)
    return t, t * n_tiles


# ----------------------------- linear kernels --------------------------------

def _linear_kernel_single(x_ref, w_ref, b_ref, o_ref, *, out_scale):
    """K fits in one block: write (x@w + b) [*scale] directly, no scratch."""
    y = jnp.dot(x_ref[...], w_ref[...], preferred_element_type=jnp.float32)
    y = y + b_ref[...]
    if out_scale != 1.0:
        y = y * out_scale
    o_ref[...] = y.astype(o_ref.dtype)


def _linear_kernel_acc(x_ref, w_ref, b_ref, o_ref, acc_ref, *, out_scale):
    """One (tm, tn) output tile; reduction over the K grid axis."""
    kk = pl.program_id(2)

    @pl.when(kk == 0)
    def _():
        acc_ref[...] = jnp.zeros_like(acc_ref)

    acc_ref[...] += jnp.dot(x_ref[...], w_ref[...],
                            preferred_element_type=jnp.float32)

    @pl.when(kk == pl.num_programs(2) - 1)
    def _():
        y = acc_ref[...] + b_ref[...]
        if out_scale != 1.0:
            y = y * out_scale
        o_ref[...] = y.astype(o_ref.dtype)


def pallas_linear(x2d, w, b, *, out_dtype=jnp.float32,
                  compute_dtype=jnp.bfloat16, out_scale=1.0,
                  tm=256, tn=256, tk=512):
    """y = (x @ W^T + b) * out_scale.  x2d: (M, K);  w: (N, K) torch layout."""
    m, kd = x2d.shape
    n = w.shape[0]

    tm_e, mp = _tile(m, tm, 8)
    tn_e, np_ = _tile(n, tn, 128)
    tk_e, kp = _tile(kd, tk, 128)

    xc = x2d.astype(compute_dtype)
    wt = jnp.transpose(w).astype(compute_dtype)          # (K, N): MXU-native RHS
    b2 = b.reshape(1, n).astype(jnp.float32)
    if (mp, kp) != (m, kd):
        xc = jnp.pad(xc, ((0, mp - m), (0, kp - kd)))
    if (kp, np_) != (kd, n):
        wt = jnp.pad(wt, ((0, kp - kd), (0, np_ - n)))
    if np_ != n:
        b2 = jnp.pad(b2, ((0, 0), (0, np_ - n)))

    k_steps = kp // tk_e
    if k_steps == 1:
        out_p = pl.pallas_call(
            functools.partial(_linear_kernel_single, out_scale=out_scale),
            out_shape=jax.ShapeDtypeStruct((mp, np_), out_dtype),
            grid=(mp // tm_e, np_ // tn_e),
            in_specs=[
                pl.BlockSpec((tm_e, kp), lambda i, j: (i, 0)),
                pl.BlockSpec((kp, tn_e), lambda i, j: (0, j)),
                pl.BlockSpec((1, tn_e), lambda i, j: (0, j)),
            ],
            out_specs=pl.BlockSpec((tm_e, tn_e), lambda i, j: (i, j)),
            compiler_params=pltpu.CompilerParams(
                dimension_semantics=("parallel", "parallel")),
        )(xc, wt, b2)
    else:
        out_p = pl.pallas_call(
            functools.partial(_linear_kernel_acc, out_scale=out_scale),
            out_shape=jax.ShapeDtypeStruct((mp, np_), out_dtype),
            grid_spec=pltpu.PrefetchScalarGridSpec(
                num_scalar_prefetch=0,
                grid=(mp // tm_e, np_ // tn_e, k_steps),
                in_specs=[
                    pl.BlockSpec((tm_e, tk_e), lambda i, j, kk: (i, kk)),
                    pl.BlockSpec((tk_e, tn_e), lambda i, j, kk: (kk, j)),
                    pl.BlockSpec((1, tn_e), lambda i, j, kk: (0, j)),
                ],
                out_specs=pl.BlockSpec((tm_e, tn_e), lambda i, j, kk: (i, j)),
                scratch_shapes=[pltpu.VMEM((tm_e, tn_e), jnp.float32)],
            ),
            compiler_params=pltpu.CompilerParams(
                dimension_semantics=("parallel", "parallel", "arbitrary")),
        )(xc, wt, b2)

    if (mp, np_) != (m, n):
        out_p = out_p[:m, :n]
    return out_p


# ---------------------------- attention kernels -------------------------------

def _attn_body(q_ref, k_ref, v_ref, bias_ref, o_ref, attn_ref, ctx_ref, *,
               n_heads, kv_valid):
    q = q_ref[0]                      # (tq, H*Dh)   bf16, already 1/sqrt(scale)-scaled
    k = k_ref[0]                      # (Sk_p, H*Dh)
    v = v_ref[0]                      # (Sk_p, H*Dhv)
    tq = q.shape[0]
    sk_p = k.shape[0]
    d_head = q.shape[1] // n_heads
    d_head_v = v.shape[1] // n_heads

    # additive bias, hoisted out of the head loop (one load + convert per tile)
    bias = None
    if bias_ref is not None:
        bias = bias_ref[0].astype(jnp.float32)
    elif kv_valid is not None and kv_valid < sk_p:
        # padded key columns, no user mask: in-register iota bias (no HBM read)
        col = lax.broadcasted_iota(jnp.int32, (tq, sk_p), 1)
        bias = jnp.where(col < kv_valid, 0.0, jnp.float32(-1e10))

    for h in range(n_heads):          # static (unrolled) loop over heads
        qh = q[:, h * d_head:(h + 1) * d_head]
        kh = k[:, h * d_head:(h + 1) * d_head]
        vh = v[:, h * d_head_v:(h + 1) * d_head_v]

        # scores: contract the last axis of both operands (no explicit .T)
        s = lax.dot_general(qh, kh, (((1,), (1,)), ((), ())),
                            preferred_element_type=jnp.float32)
        if bias is not None:
            s = s + bias

        m = jnp.max(s, axis=-1, keepdims=True)
        p = jnp.exp(s - m)
        denom = jnp.sum(p, axis=-1, keepdims=True)
        # NOTE: approx reciprocal (EUP slot) -> rows sum to 1 only to ~1e-3.
        attn = p * pl.reciprocal(denom, approx=True)

        attn_ref[0, h] = attn.astype(attn_ref.dtype)      # bf16 writeback
        ctx_ref[:, h * d_head_v:(h + 1) * d_head_v] = jnp.dot(
            attn.astype(vh.dtype), vh, preferred_element_type=jnp.float32)

    # single lane-dense store of the merged-head context block
    o_ref[0] = ctx_ref[...].astype(o_ref.dtype)


def _attn_kernel(q_ref, k_ref, v_ref, o_ref, attn_ref, ctx_ref, *,
                 n_heads, kv_valid):
    _attn_body(q_ref, k_ref, v_ref, None, o_ref, attn_ref, ctx_ref,
               n_heads=n_heads, kv_valid=kv_valid)


def _attn_kernel_bias(q_ref, k_ref, v_ref, bias_ref, o_ref, attn_ref, ctx_ref,
                      *, n_heads, kv_valid):
    _attn_body(q_ref, k_ref, v_ref, bias_ref, o_ref, attn_ref, ctx_ref,
               n_heads=n_heads, kv_valid=kv_valid)


# ------------------------------- forward -------------------------------------

def mha_forward(q, k, v, params, n_heads, mask=None, *, in_proj=True,
                compute_dtype=jnp.bfloat16, q_block=256):
    """Matches MHA.forward semantics (eval mode: dropout is identity).

    Returns (y, attention_weight):
      y: (B, Sq, d_value) f32;  attention_weight: (B, H, Sq, Sk) bf16
      (weights are emitted in bf16 to halve the dominant HBM writeback).
    """
    B, Sq, d_model = q.shape
    Sk = k.shape[1]
    d_value = v.shape[-1]
    scale = d_model / n_heads
    inv_scale = 1.0 / math.sqrt(scale)

    # ---- input projections (1/sqrt(scale) folded into the Q epilogue) ------
    if not in_proj:
        qp = (q.reshape(B * Sq, d_model).astype(jnp.float32)
              * inv_scale).astype(compute_dtype)
        kp_ = k.reshape(B * Sk, d_model).astype(compute_dtype)
        vp = v.reshape(B * Sk, d_value).astype(compute_dtype)
    elif (k is q) and (v is q) and (d_value == d_model):
        # self-attention: fused [Wq|Wk|Wv] -> activations read from HBM once
        w_qkv = jnp.concatenate(
            [params["w_q"] * inv_scale, params["w_k"], params["w_v"]], axis=0)
        b_qkv = jnp.concatenate(
            [params["b_q"] * inv_scale, params["b_k"], params["b_v"]], axis=0)
        qkv = pallas_linear(q.reshape(B * Sq, d_model), w_qkv, b_qkv,
                            out_dtype=compute_dtype,
                            compute_dtype=compute_dtype)
        qp = qkv[:, :d_model]
        kp_ = qkv[:, d_model:2 * d_model]
        vp = qkv[:, 2 * d_model:]
    else:
        qp = pallas_linear(q.reshape(B * Sq, d_model), params["w_q"],
                           params["b_q"], out_dtype=compute_dtype,
                           compute_dtype=compute_dtype, out_scale=inv_scale)
        kp_ = pallas_linear(k.reshape(B * Sk, d_model), params["w_k"],
                            params["b_k"], out_dtype=compute_dtype,
                            compute_dtype=compute_dtype)
        vp = pallas_linear(v.reshape(B * Sk, d_value), params["w_v"],
                           params["b_v"], out_dtype=compute_dtype,
                           compute_dtype=compute_dtype)

    # free reshapes only -- heads are split inside the attention kernel
    qh = qp.reshape(B, Sq, d_model)
    kh = kp_.reshape(B, Sk, d_model)
    vh = vp.reshape(B, Sk, d_value)

    # ---- padding / tiling for the attention kernel -------------------------
    tq, Sq_p = _tile(Sq, q_block, 8)
    Sk_p = Sk if Sk <= 128 else _round_up(Sk, 128)   # lane-dense attn stores

    if Sq_p != Sq:
        qh = jnp.pad(qh, ((0, 0), (0, Sq_p - Sq), (0, 0)))
    if Sk_p != Sk:
        kh = jnp.pad(kh, ((0, 0), (0, Sk_p - Sk), (0, 0)))
        vh = jnp.pad(vh, ((0, 0), (0, Sk_p - Sk), (0, 0)))

    # additive mask bias, built once (bf16) -- no per-head compare+select and
    # no broadcast over heads; also encodes the padded key columns.
    bias = None
    if mask is not None:
        maskf = jnp.asarray(mask)
        if maskf.ndim == 4:
            # TODO(synk): per-head masks not supported; conditional-DETR masks
            #             are head-invariant, so drop the (broadcast) head dim.
            maskf = maskf[:, 0]
        maskf = jnp.broadcast_to(maskf, (B, Sq, Sk))
        bias = jnp.where(maskf == 0, jnp.float32(-1e10), jnp.float32(0.0))
        if (Sq_p, Sk_p) != (Sq, Sk):
            bias = jnp.pad(bias, ((0, 0), (0, Sq_p - Sq), (0, Sk_p - Sk)),
                           constant_values=-1e10)
        bias = bias.astype(jnp.bfloat16)

    grid = (B, Sq_p // tq)
    in_specs = [
        pl.BlockSpec((1, tq, d_model), lambda b, qi: (b, qi, 0)),
        pl.BlockSpec((1, Sk_p, d_model), lambda b, qi: (b, 0, 0)),
        pl.BlockSpec((1, Sk_p, d_value), lambda b, qi: (b, 0, 0)),
    ]
    args = [qh, kh, vh]
    kv_valid = Sk if Sk_p != Sk else None
    if bias is not None:
        in_specs.append(pl.BlockSpec((1, tq, Sk_p), lambda b, qi: (b, qi, 0)))
        args.append(bias)
        kern = functools.partial(_attn_kernel_bias, n_heads=n_heads,
                                 kv_valid=kv_valid)
    else:
        kern = functools.partial(_attn_kernel, n_heads=n_heads,
                                 kv_valid=kv_valid)

    # TODO(synk): for Sk beyond ~2K, add a kv grid axis with online softmax to
    #             bound the (tq, Sk) working set on v7x's 64 MiB VMEM.
    y_ctx, attn = pl.pallas_call(
        kern,
        out_shape=(
            jax.ShapeDtypeStruct((B, Sq_p, d_value), compute_dtype),
            jax.ShapeDtypeStruct((B, n_heads, Sq_p, Sk_p), jnp.bfloat16),
        ),
        grid=grid,
        in_specs=in_specs,
        out_specs=(
            pl.BlockSpec((1, tq, d_value), lambda b, qi: (b, qi, 0)),
            pl.BlockSpec((1, n_heads, tq, Sk_p), lambda b, qi: (b, 0, qi, 0)),
        ),
        scratch_shapes=[pltpu.VMEM((tq, d_value), jnp.float32)],
        compiler_params=pltpu.CompilerParams(
            dimension_semantics=("parallel", "parallel")),
    )(*args)

    if Sq_p != Sq:
        y_ctx = y_ctx[:, :Sq]
    if (Sq_p, Sk_p) != (Sq, Sk):
        attn = attn[:, :, :Sq, :Sk]

    # TODO(synk): training-time dropout on attention weights not implemented
    #             (module is evaluated in eval mode -> dropout is identity).

    # context is already (B, Sq, H*Dh_v): no merge transpose before w_o
    y = pallas_linear(y_ctx.reshape(B * Sq, d_value), params["w_o"],
                      params["b_o"], out_dtype=jnp.float32,
                      compute_dtype=compute_dtype)
    return y.reshape(B, Sq, d_value), attn


# ------------------------- deterministic parameters --------------------------

def _xavier_uniform(key, shape):
    fan_out, fan_in = shape
    bound = math.sqrt(6.0 / (fan_in + fan_out))
    return jax.random.uniform(key, shape, jnp.float32, -bound, bound)


def init_mha_params(key, d_model, d_value):
    k1, k2, k3, k4 = jax.random.split(key, 4)
    return {
        "w_q": _xavier_uniform(k1, (d_model, d_model)),
        "b_q": jnp.zeros((d_model,), jnp.float32),
        "w_k": _xavier_uniform(k2, (d_model, d_model)),
        "b_k": jnp.zeros((d_model,), jnp.float32),
        "w_v": _xavier_uniform(k3, (d_value, d_value)),
        "b_v": jnp.zeros((d_value,), jnp.float32),
        "w_o": _xavier_uniform(k4, (d_value, d_value)),
        "b_o": jnp.zeros((d_value,), jnp.float32),
    }


# ------------------------------ reference -----------------------------------

def mha_reference(q, k, v, params, n_heads, mask=None):
    B, Sq, d_model = q.shape
    Sk = k.shape[1]
    d_value = v.shape[-1]
    d_head = d_model // n_heads
    d_head_v = d_value // n_heads
    scale = d_model / n_heads

    qp = q @ params["w_q"].T + params["b_q"]
    kp = k @ params["w_k"].T + params["b_k"]
    vp = v @ params["w_v"].T + params["b_v"]

    qh = qp.reshape(B, Sq, n_heads, d_head).transpose(0, 2, 1, 3)
    kh = kp.reshape(B, Sk, n_heads, d_head).transpose(0, 2, 1, 3)
    vh = vp.reshape(B, Sk, n_heads, d_head_v).transpose(0, 2, 1, 3)

    s = jnp.einsum("bhqd,bhkd->bhqk", qh, kh) / math.sqrt(scale)
    if mask is not None:
        s = jnp.where(mask == 0, -1e10, s)
    attn = jax.nn.softmax(s, axis=-1)
    y = jnp.einsum("bhqk,bhkd->bhqd", attn, vh)
    y = y.transpose(0, 2, 1, 3).reshape(B, Sq, d_value)
    y = y @ params["w_o"].T + params["b_o"]
    return y, attn


# --------------------------------- main --------------------------------------

if __name__ == "__main__":
    B, S, d_model, n_heads = 2, 8, 32, 4
    d_value = d_model

    key = jax.random.PRNGKey(0)
    kq, kk, kv, kp, km = jax.random.split(key, 5)
    q = jax.random.normal(kq, (B, S, d_model), jnp.float32)
    k = jax.random.normal(kk, (B, S, d_model), jnp.float32)
    v = jax.random.normal(kv, (B, S, d_value), jnp.float32)
    params = init_mha_params(kp, d_model, d_value)
    mask = jax.random.uniform(km, (B, 1, S, S)) > 0.3   # head-invariant mask

    # unmasked cross-attention path
    y, attn = mha_forward(q, k, v, params, n_heads, mask=None)
    jax.block_until_ready((y, attn))
    y_ref, attn_ref = mha_reference(q, k, v, params, n_heads, mask=None)
    assert y.shape == (B, S, d_value)
    assert attn.shape == (B, n_heads, S, S)
    # bf16 MXU inputs (f32 accumulation) + bf16 attn writeback -> compare
    # against the f32 reference with loosened tolerances.
    assert jnp.allclose(y, y_ref, atol=8e-2, rtol=8e-2)
    assert jnp.allclose(attn.astype(jnp.float32), attn_ref, atol=5e-2, rtol=5e-2)

    # masked path (additive bf16 bias)
    ym, attnm = mha_forward(q, k, v, params, n_heads, mask=mask)
    jax.block_until_ready((ym, attnm))
    ym_ref, attnm_ref = mha_reference(q, k, v, params, n_heads, mask=mask)
    assert jnp.allclose(ym, ym_ref, atol=8e-2, rtol=8e-2)
    assert jnp.allclose(attnm.astype(jnp.float32), attnm_ref, atol=5e-2, rtol=5e-2)

    # self-attention path (fused QKV projection)
    ys, attns = mha_forward(q, q, q, params, n_heads, mask=None)
    jax.block_until_ready((ys, attns))
    ys_ref, attns_ref = mha_reference(q, q, q, params, n_heads, mask=None)
    assert jnp.allclose(ys, ys_ref, atol=8e-2, rtol=8e-2)
    assert jnp.allclose(attns.astype(jnp.float32), attns_ref, atol=5e-2, rtol=5e-2)

    print("KERNEL_OK")
</pallas_src>

<mosaic_0001>
module attributes {stable_mosaic.version = 11 : i64} {
  func.func @_linear_kernel_single(%arg0: i32, %arg1: i32, %arg2: memref<16x32xbf16, #tpu.memory_space<vmem>>, %arg3: memref<32x32xbf16, #tpu.memory_space<vmem>>, %arg4: memref<1x32xf32, #tpu.memory_space<vmem>>, %arg5: memref<16x32xbf16, #tpu.memory_space<vmem>>) attributes {dimension_semantics = [#tpu.dimension_semantics<parallel>, #tpu.dimension_semantics<parallel>], iteration_bounds = array<i64: 1, 1>, scalar_prefetch = 0 : i64, scratch_operands = 0 : i64, tpu.core_type = #tpu.core_type<tc>, window_params = [{transform_indices = @transform_0, window_bounds = array<i64: 16, 32>}, {transform_indices = @transform_1, window_bounds = array<i64: 32, 32>}, {transform_indices = @transform_2, window_bounds = array<i64: 1, 32>}, {transform_indices = @transform_3, window_bounds = array<i64: 16, 32>}]} {
    %c0 = arith.constant 0 : index
    %c0_0 = arith.constant 0 : index
    %0 = vector.load %arg2[%c0, %c0_0] : memref<16x32xbf16, #tpu.memory_space<vmem>>, vector<16x32xbf16>
    %c0_1 = arith.constant 0 : index
    %c0_2 = arith.constant 0 : index
    %1 = vector.load %arg3[%c0_1, %c0_2] : memref<32x32xbf16, #tpu.memory_space<vmem>>, vector<32x32xbf16>
    %cst = arith.constant dense<0.000000e+00> : vector<16x32xf32>
    %2 = tpu.matmul %0, %1, %cst {dimension_numbers = #tpu.dot_dimension_numbers<[1], [0], [0], [1], [0, 0, 1, 1], [], []>} : vector<16x32xbf16>, vector<32x32xbf16>, vector<16x32xf32> -> vector<16x32xf32>
    %c0_3 = arith.constant 0 : index
    %c0_4 = arith.constant 0 : index
    %3 = vector.load %arg4[%c0_3, %c0_4] : memref<1x32xf32, #tpu.memory_space<vmem>>, vector<1x32xf32>
    %4 = vector.broadcast %3 : vector<1x32xf32> to vector<16x32xf32>
    %5 = arith.addf %2, %4 : vector<16x32xf32>
    %cst_5 = arith.constant 0.353553385 : f32
    %6 = vector.broadcast %cst_5 : f32 to vector<16x32xf32>
    %7 = arith.mulf %5, %6 : vector<16x32xf32>
    %8 = arith.truncf %7 : vector<16x32xf32> to vector<16x32xbf16>
    %c0_6 = arith.constant 0 : index
    %c0_7 = arith.constant 0 : index
    %9 = vector.load %arg5[%c0_6, %c0_7] : memref<16x32xbf16, #tpu.memory_space<vmem>>, vector<16x32xbf16>
    tpu.vector_store %arg5[%c0_6, %c0_7], %8 {strides = array<i32>} : memref<16x32xbf16, #tpu.memory_space<vmem>>, vector<16x32xbf16>,
    return
  }
  func.func @transform_0(%arg0: i32, %arg1: i32) -> (i32, i32) {
    %c0_i32 = arith.constant 0 : i32
    %c0_i32_0 = arith.constant 0 : i32
    return %arg0, %c0_i32 : i32, i32
  }
  func.func @transform_1(%arg0: i32, %arg1: i32) -> (i32, i32) {
    %c0_i32 = arith.constant 0 : i32
    %c0_i32_0 = arith.constant 0 : i32
    return %c0_i32, %arg1 : i32, i32
  }
  func.func @transform_2(%arg0: i32, %arg1: i32) -> (i32, i32) {
    %c0_i32 = arith.constant 0 : i32
    %c0_i32_0 = arith.constant 0 : i32
    return %c0_i32, %arg1 : i32, i32
  }
  func.func @transform_3(%arg0: i32, %arg1: i32) -> (i32, i32) {
    %c0_i32 = arith.constant 0 : i32
    return %arg0, %arg1 : i32, i32
  }
}

</mosaic_0001>

<llo_original>
// kernel: tpu_custom_call.1
$region0: #{tpu_custom_call.1}
  #allocation0 [shape = 'u32[]', space=smem, size = 0x4, offset = 0x4, fixed_abs, tag = 'smem constant byte address 0x4 - core index']
  #allocation1 [shape = 'u32[72,128]{1,0:T(1,128)}', space=vmem, size = 0x9000, scoped, tag = 'internal scratch']
  %s0 = inlined_call_operand.hbm [shape: bf16[16,32], index: 0, kind: input, shape index: {}]
  %s1 = inlined_call_operand.hbm [shape: bf16[32,32], index: 1, kind: input, shape index: {}]
  %s2 = inlined_call_operand.vmem [shape: f32[1,32], index: 2, kind: input, shape index: {}]
  %s3 = inlined_call_operand.hbm [shape: bf16[16,32], index: 3, kind: output, shape index: {}]
  %s4 = sld [smem:[#allocation0]]
  $region30: #{tpu_custom_call.1} parent=0
    _
  %s6 = ssub.s32 1, %s4
  %s7 = scalar_select 0, %s6, %s4
  $region1: #{tpu_custom_call.1} parent=0
    #allocation2 [shape = 'u8[4096]{0}', space=vmem, size = 0x1000, scoped, tag = 'input window, operand 0, single buffered']
    #allocation3 [shape = 's32[1]{0}', space=sflag, size = 0x4, scoped, tag = 'scoped memory for tpu_custom_call.1']
    #allocation4 [shape = 's32[1]{0}', space=sflag, size = 0x4, scoped, tag = 'scoped memory for tpu_custom_call.1']
    #allocation5 [shape = 'u8[8192]{0}', space=vmem, size = 0x2000, scoped, tag = 'input window, operand 1, single buffered']
    #allocation6 [shape = 's32[1]{0}', space=sflag, size = 0x4, scoped, tag = 'scoped memory for tpu_custom_call.1']
    #allocation7 [shape = 'u8[4096]{0}', space=vmem, size = 0x1000, scoped, tag = 'output window, operand 0, single buffered']
    %8 = vsyncpa [#allocation3], 0
    %9 = vsyncpa [#allocation6], 0
    %10 = vsyncpa [#allocation4], 0
    // Predicated region
    $region2: #{tpu_custom_call.1} parent=1 // pred_check
      _
    $region3: #{tpu_custom_call.1} parent=1 // pred_check_branch
      %12 = sbr.rel (0) target = $region5
    $region4: #{tpu_custom_call.1} parent=1 // pred_region
      %14 = vsyncadd [#allocation3], 0
      %s15 = sshll.u32 %s0, 4
      %s16 = int_to_ptr.hbm [resolvable:$true] %s15
      %s17 = sshll.u32 [#allocation2], 4
      %s18 = int_to_ptr.vmem [resolvable:$true] %s17
      %23 = dma.hbm_to_vmem [thread:$0]  %s16, 128, %s18, [#allocation3], 64, 64, 4
    $region5: #{tpu_custom_call.1} parent=1 // pred_fallthru
      _
    // Predicated region
    $region6: #{tpu_custom_call.1} parent=1 // pred_check
      _
    $region7: #{tpu_custom_call.1} parent=1 // pred_check_branch
      %25 = sbr.rel (0) target = $region9
    $region8: #{tpu_custom_call.1} parent=1 // pred_region
      %27 = vsyncadd [#allocation6], 0
      %s28 = sshll.u32 %s1, 4
      %s29 = int_to_ptr.hbm [resolvable:$true] %s28
      %s30 = sshll.u32 [#allocation5], 4
      %s31 = int_to_ptr.vmem [resolvable:$true] %s30
      %36 = dma.hbm_to_vmem [thread:$0]  %s29, 256, %s31, [#allocation6], 64, 64, 4
    $region9: #{tpu_custom_call.1} parent=1 // pred_fallthru
      _
    // Predicated region
    $region10: #{tpu_custom_call.1} parent=1 // pred_check
      _
    $region11: #{tpu_custom_call.1} parent=1 // pred_check_branch
      %38 = sbr.rel (0) target = $region13
    $region12: #{tpu_custom_call.1} parent=1 // pred_region
      _
    $region13: #{tpu_custom_call.1} parent=1 // pred_fallthru
      _
    // Predicated region
    $region14: #{tpu_custom_call.1} parent=1 // pred_check
      _
    $region15: #{tpu_custom_call.1} parent=1 // pred_check_branch
      %40 = sbr.rel (0) target = $region17
    $region16: #{tpu_custom_call.1} parent=1 // pred_region
      %42 = dma.done [#allocation3], 128
    $region17: #{tpu_custom_call.1} parent=1 // pred_fallthru
      _
    // Predicated region
    $region18: #{tpu_custom_call.1} parent=1 // pred_check
      _
    $region19: #{tpu_custom_call.1} parent=1 // pred_check_branch
      %44 = sbr.rel (0) target = $region21
    $region20: #{tpu_custom_call.1} parent=1 // pred_region
      %46 = dma.done [#allocation6], 256
    $region21: #{tpu_custom_call.1} parent=1 // pred_fallthru
      _
    %v48 = vld [vmem:[#allocation2] sm:$0xf]
    %v49 = vld [vmem:[#allocation2 + $0x4] sm:$0xf]
    %v50 = vld [vmem:[#allocation5] sm:$0xf]
    %v51 = vld [vmem:[#allocation5 + $0x4] sm:$0xf]
    %v52 = vld [vmem:[#allocation5 + $0x8] sm:$0xf]
    %v53 = vld [vmem:[#allocation5 + $0xc] sm:$0xf]
    %v54 = vld [vmem:[%s2] sm:$0x1]
    %v56 = vperm.slane %v54, 0
    %v60 = vunpack.c.l.b16 %v48
    %v61 = vunpack.c.l.b16 %v49
    %v62 = vpack.c.b16 %v61, %v60
    %v67 = vunpack.c.l.b16 %v50
    %v68 = vunpack.c.l.b16 %v51
    %v69 = vunpack.c.l.b16 %v52
    %v70 = vunpack.c.l.b16 %v53
    %v71 = vpack.c.b16 %v68, %v67
    %v72 = vpack.c.b16 %v70, %v69
    %vm75 = vcmask 261120
    %v77 = vsel %vm75, %v62, 0
    %79 = vmatpush.bf16.msra.mxu0 0
    %80 = vmatpush.bf16.msra.mxu0 0
    %81 = vmatpush.bf16.msra.mxu0 0
    %82 = vmatpush.bf16.msra.mxu0 0
    %83 = vmatpush.bf16.msra.mxu0 0
    %84 = vmatpush.bf16.msra.mxu0 0
    %85 = vmatpush.bf16.msra.mxu0 %v72
    %86 = vmatpush.bf16.msra.mxu0 %v71
    %87 = vmatmul.bf16.gmra.mxu0 %v77
    %v88 = vpop.f32.mrf.mxu0
    %v89 = vadd.f32 %v56, %v88
    %v90 = vpop.f32.mrf.mxu0
    %v91 = vadd.f32 %v56, %v90
    %92 = vdwg.mxu0
    %v93 = vmul.f32 %v89, 0.35355338
    %v94 = vmul.f32 %v91, 0.35355338
    %v95 = vpack.c.bf16 %v93, %v93
    %v96 = vpack.c.bf16 %v94, %v94
    %vm97 = vcmask 257024
    %98 = vst.msk [vmem:[#allocation7] sm:$0xf] %vm97, %v95
    %99 = vst.msk [vmem:[#allocation7 + $0x4] sm:$0xf] %vm97, %v96
    // Predicated region
    $region22: #{tpu_custom_call.1} parent=1 // pred_check
      _
    $region23: #{tpu_custom_call.1} parent=1 // pred_check_branch
      %101 = sbr.rel (0) target = $region25
    $region24: #{tpu_custom_call.1} parent=1 // pred_region
      %103 = vsyncadd [#allocation4], 0
      %s104 = sshll.u32 [#allocation7], 4
      %s105 = int_to_ptr.vmem [resolvable:$true] %s104
      %s106 = sshll.u32 %s3, 4
      %s107 = int_to_ptr.hbm [resolvable:$true] %s106
      %112 = dma.vmem_to_hbm [thread:$0]  %s105, 128, %s107, [#allocation4], 64, 64, 4
    $region25: #{tpu_custom_call.1} parent=1 // pred_fallthru
      _
    // Predicated region
    $region26: #{tpu_custom_call.1} parent=1 // pred_check
      _
    $region27: #{tpu_custom_call.1} parent=1 // pred_check_branch
      %114 = sbr.rel (0) target = $region29
    $region28: #{tpu_custom_call.1} parent=1 // pred_region
      %116 = dma.done [#allocation4], 128
    $region29: #{tpu_custom_call.1} parent=1 // pred_fallthru
      _
    %117 = vsyncpa [#allocation3], 1
    %118 = vsyncpa [#allocation6], 1
    %119 = vsyncpa [#allocation4], 1

</llo_original>
